<compile_context>
chip_gen: v5e
topology: v5e:2x2
jax: 0.10.0
libtpu: 0.0.40
codegen_flags: <defaults>
</compile_context>

<pallas_src>
import jax
import jax.numpy as jnp
from jax.experimental import pallas as pl
from jax.experimental.pallas import tpu as pltpu


_LANE = 128          # lane width: batch tiles must be multiples of this
_CHUNK = 2048        # in-kernel compute chunk width (lanes)
_MAX_TB = 32768      # cap on the batch tile
_TARGET_STEPS = 8    # aim for ~8 grid steps (>=2 keeps v7x megacore busy)


def _round_up(n, m):
    return ((n + m - 1) // m) * m


def _cdiv(a, b):
    return -(-a // b)


def _normalize_tile(tb):
    tb = max(_LANE, _round_up(int(tb), _LANE))
    if tb > _CHUNK:
        # Keep the in-kernel chunk loop exact (chunk width divides the tile).
        tb = _round_up(tb, _CHUNK)
    return min(tb, _round_up(_MAX_TB, _CHUNK))


def _choose_tile(B):
    """Pick a batch tile: ~_TARGET_STEPS grid steps, lane/chunk aligned, capped."""
    b128 = _round_up(max(B, 1), _LANE)
    tb = _round_up(_cdiv(b128, _TARGET_STEPS), _LANE)
    return _normalize_tile(tb)


def _mlp_kernel(x_ref, w1_ref, b1_ref, w2_ref, b2_ref, w3_ref, b3_ref, o_ref):
    # Weights/biases are VMEM-resident (constant index_maps); load once per step.
    w1 = w1_ref[...]   # (10, 4)
    b1 = b1_ref[...]   # (10, 1)
    w2 = w2_ref[...]   # (10, 10)
    b2 = b2_ref[...]   # (10, 1)
    w3 = w3_ref[...]   # (3, 10)
    b3 = b3_ref[...]   # (3, 1)

    tb = x_ref.shape[-1]          # static block width (multiple of 128)
    cw = min(_CHUNK, tb)          # chunk width; divides tb by construction
    n_chunks = tb // cw

    def chunk_body(c, carry):
        start = pl.multiple_of(c * cw, cw)
        x = x_ref[:, pl.ds(start, cw)]                       # (4, cw)

        # fc1 + relu : (10,4) @ (4,cw) -> (10,cw)
        h1 = jnp.dot(w1, x, preferred_element_type=jnp.float32) + b1
        h1 = jnp.maximum(h1, 0.0)

        # fc2 + relu : (10,10) @ (10,cw) -> (10,cw)
        h2 = jnp.dot(w2, h1, preferred_element_type=jnp.float32) + b2
        h2 = jnp.maximum(h2, 0.0)

        # fc3 : (3,10) @ (10,cw) -> (3,cw)
        logits = jnp.dot(w3, h2, preferred_element_type=jnp.float32) + b3

        # Numerically-stable log_softmax over the 3-class axis (axis 0),
        # expressed as elementwise VPU/EUP ops (no cross-lane reduction).
        l0 = logits[0:1, :]
        l1 = logits[1:2, :]
        l2 = logits[2:3, :]
        m = jnp.maximum(jnp.maximum(l0, l1), l2)             # (1, cw)
        lse = jnp.log(jnp.exp(l0 - m) + jnp.exp(l1 - m) + jnp.exp(l2 - m))
        o_ref[:, pl.ds(start, cw)] = ((logits - m) - lse).astype(o_ref.dtype)
        return carry

    jax.lax.fori_loop(0, n_chunks, chunk_body, 0, unroll=True)


def classifier_forward_t(xt, params, *, block_b=None):
    """Preferred layout: xt (4, B) float32 -> (3, B) float32 log-probs.

    Keeping (features, batch) end-to-end avoids any wrapper-side transpose
    traffic around the HBM-bound kernel.
    """
    w1, b1, w2, b2, w3, b3 = params
    B = xt.shape[1]
    if B == 0:
        return jnp.zeros((3, 0), jnp.float32)

    tb = _choose_tile(B) if block_b is None else _normalize_tile(block_b)
    Bp = _round_up(B, tb)
    if Bp != B:
        # Pad along lanes only (already transposed): real data is never re-copied.
        xt = jnp.pad(xt, ((0, 0), (0, Bp - B)))

    b1c = b1.reshape(-1, 1)                                  # (10, 1)
    b2c = b2.reshape(-1, 1)                                  # (10, 1)
    b3c = b3.reshape(-1, 1)                                  # (3, 1)

    resident = lambda i: (0, 0)   # same block every step -> DMA'd once, VMEM-resident
    # TODO(synk): optionally pack the 6 tiny params into one array / Buffered(1)
    # to shave per-call DMA-descriptor setup (small win, skipped for robustness).

    out_t = pl.pallas_call(
        _mlp_kernel,
        out_shape=jax.ShapeDtypeStruct((3, Bp), jnp.float32),
        grid_spec=pltpu.PrefetchScalarGridSpec(
            num_scalar_prefetch=0,
            grid=(Bp // tb,),
            in_specs=[
                pl.BlockSpec((4, tb), lambda i: (0, i)),     # x (transposed), batch-tiled
                pl.BlockSpec((10, 4), resident),             # w1
                pl.BlockSpec((10, 1), resident),             # b1
                pl.BlockSpec((10, 10), resident),            # w2
                pl.BlockSpec((10, 1), resident),             # b2
                pl.BlockSpec((3, 10), resident),             # w3
                pl.BlockSpec((3, 1), resident),              # b3
            ],
            out_specs=pl.BlockSpec((3, tb), lambda i: (0, i)),  # lane-dense output tile
        ),
        compiler_params=pltpu.CompilerParams(
            dimension_semantics=("parallel",),               # megacore split on v7x
        ),
    )(xt, w1, b1c, w2, b2c, w3, b3c)

    # Slice padding off while still in the lane-dense layout.
    return out_t[:, :B] if Bp != B else out_t


def classifier_forward(x, params, *, block_b=None):
    """Row-major convenience wrapper: x (B, 4) float32 -> (B, 3) log-probs.

    Transposes only at the boundary; padding happens after the input transpose
    and the output is sliced before its transpose, so padded columns are never
    materialized by the wrapper.
    """
    B = x.shape[0]
    if B == 0:
        return jnp.zeros((0, 3), jnp.float32)
    out_t = classifier_forward_t(x.T, params, block_b=block_b)
    return out_t.T


def init_params(key):
    """Deterministic init mimicking torch.nn.Linear default (uniform +/- 1/sqrt(fan_in)).

    Weights use the torch convention (out_features, in_features); biases are
    (out_features,). The kernel consumes them directly in this layout.
    """
    dims = [(4, 10), (10, 10), (10, 3)]
    params = []
    for fan_in, fan_out in dims:
        key, kw, kb = jax.random.split(key, 3)
        bound = 1.0 / (float(fan_in) ** 0.5)
        w = jax.random.uniform(kw, (fan_out, fan_in), jnp.float32, -bound, bound)
        b = jax.random.uniform(kb, (fan_out,), jnp.float32, -bound, bound)
        params.extend([w, b])
    return tuple(params)


def _reference_forward(x, params):
    w1, b1, w2, b2, w3, b3 = params
    hp = jax.lax.Precision.HIGHEST
    h1 = jnp.maximum(jnp.dot(x, w1.T, precision=hp) + b1, 0.0)
    h2 = jnp.maximum(jnp.dot(h1, w2.T, precision=hp) + b2, 0.0)
    logits = jnp.dot(h2, w3.T, precision=hp) + b3
    return jax.nn.log_softmax(logits, axis=1)


if __name__ == "__main__":
    key = jax.random.PRNGKey(0)
    key, kx = jax.random.split(key)
    params = init_params(key)

    # Primary small-shape test (single tile, auto tile selection).
    B = 8
    x = jax.random.normal(kx, (B, 4), jnp.float32)
    out = jax.block_until_ready(classifier_forward(x, params))
    ref = _reference_forward(x, params)
    assert out.shape == (B, 3)
    assert jnp.allclose(out, ref, atol=1e-4, rtol=1e-4), "mismatch vs reference (B=8)"

    # Multi-tile + ragged-batch test (exercises the batch grid, padding and the
    # in-kernel chunk loop with a forced small tile).
    B2 = 300
    key, kx2 = jax.random.split(key)
    x2 = jax.random.normal(kx2, (B2, 4), jnp.float32)
    out2 = jax.block_until_ready(classifier_forward(x2, params, block_b=128))
    ref2 = _reference_forward(x2, params)
    assert out2.shape == (B2, 3)
    assert jnp.allclose(out2, ref2, atol=1e-4, rtol=1e-4), "mismatch vs reference (B=300)"

    # Transposed-layout API (no wrapper transposes at all).
    out3 = jax.block_until_ready(classifier_forward_t(x2.T, params))
    assert out3.shape == (3, B2)
    assert jnp.allclose(out3.T, ref2, atol=1e-4, rtol=1e-4), "mismatch vs reference (_t)"

    print("KERNEL_OK")
</pallas_src>

<mosaic_0001>
module attributes {stable_mosaic.version = 11 : i64} {
  func.func @_mlp_kernel(%arg0: i32, %arg1: memref<4x128xf32, #tpu.memory_space<vmem>>, %arg2: memref<10x4xf32, #tpu.memory_space<vmem>>, %arg3: memref<10x1xf32, #tpu.memory_space<vmem>>, %arg4: memref<10x10xf32, #tpu.memory_space<vmem>>, %arg5: memref<10x1xf32, #tpu.memory_space<vmem>>, %arg6: memref<3x10xf32, #tpu.memory_space<vmem>>, %arg7: memref<3x1xf32, #tpu.memory_space<vmem>>, %arg8: memref<3x128xf32, #tpu.memory_space<vmem>>) attributes {dimension_semantics = [#tpu.dimension_semantics<parallel>], iteration_bounds = array<i64: 1>, scalar_prefetch = 0 : i64, scratch_operands = 0 : i64, tpu.core_type = #tpu.core_type<tc>, window_params = [{transform_indices = @transform_0, window_bounds = array<i64: 4, 128>}, {pipeline_mode = #tpu.pipeline_mode<synchronous>, transform_indices = @transform_1, window_bounds = array<i64: 10, 4>}, {pipeline_mode = #tpu.pipeline_mode<synchronous>, transform_indices = @transform_2, window_bounds = array<i64: 10, 1>}, {pipeline_mode = #tpu.pipeline_mode<synchronous>, transform_indices = @transform_3, window_bounds = array<i64: 10, 10>}, {pipeline_mode = #tpu.pipeline_mode<synchronous>, transform_indices = @transform_4, window_bounds = array<i64: 10, 1>}, {pipeline_mode = #tpu.pipeline_mode<synchronous>, transform_indices = @transform_5, window_bounds = array<i64: 3, 10>}, {pipeline_mode = #tpu.pipeline_mode<synchronous>, transform_indices = @transform_6, window_bounds = array<i64: 3, 1>}, {transform_indices = @transform_7, window_bounds = array<i64: 3, 128>}]} {
    %c0 = arith.constant 0 : index
    %c0_0 = arith.constant 0 : index
    %0 = vector.load %arg2[%c0, %c0_0] : memref<10x4xf32, #tpu.memory_space<vmem>>, vector<10x4xf32>
    %c0_1 = arith.constant 0 : index
    %c0_2 = arith.constant 0 : index
    %1 = vector.load %arg3[%c0_1, %c0_2] : memref<10x1xf32, #tpu.memory_space<vmem>>, vector<10x1xf32>
    %c0_3 = arith.constant 0 : index
    %c0_4 = arith.constant 0 : index
    %2 = vector.load %arg4[%c0_3, %c0_4] : memref<10x10xf32, #tpu.memory_space<vmem>>, vector<10x10xf32>
    %c0_5 = arith.constant 0 : index
    %c0_6 = arith.constant 0 : index
    %3 = vector.load %arg5[%c0_5, %c0_6] : memref<10x1xf32, #tpu.memory_space<vmem>>, vector<10x1xf32>
    %c0_7 = arith.constant 0 : index
    %c0_8 = arith.constant 0 : index
    %4 = vector.load %arg6[%c0_7, %c0_8] : memref<3x10xf32, #tpu.memory_space<vmem>>, vector<3x10xf32>
    %c0_9 = arith.constant 0 : index
    %c0_10 = arith.constant 0 : index
    %5 = vector.load %arg7[%c0_9, %c0_10] : memref<3x1xf32, #tpu.memory_space<vmem>>, vector<3x1xf32>
    %c0_i32 = arith.constant 0 : i32
    %c128_i32 = arith.constant 128 : i32
    %6 = arith.muli %c0_i32, %c128_i32 : i32
    %7 = tpu.assume_multiple %6, 128 : i32
    %c0_11 = arith.constant 0 : index
    %8 = arith.index_cast %7 : i32 to index
    %9 = vector.load %arg1[%c0_11, %8] : memref<4x128xf32, #tpu.memory_space<vmem>>, vector<4x128xf32>
    %cst = arith.constant dense<0.000000e+00> : vector<10x128xf32>
    %10 = tpu.matmul %0, %9, %cst {dimension_numbers = #tpu.dot_dimension_numbers<[1], [0], [0], [1], [0, 0, 1, 1], [], []>} : vector<10x4xf32>, vector<4x128xf32>, vector<10x128xf32> -> vector<10x128xf32>
    %11 = vector.broadcast %1 : vector<10x1xf32> to vector<10x128xf32>
    %12 = arith.addf %10, %11 : vector<10x128xf32>
    %cst_12 = arith.constant 0.000000e+00 : f32
    %13 = vector.broadcast %cst_12 : f32 to vector<10x128xf32>
    %14 = arith.maximumf %12, %13 : vector<10x128xf32>
    %cst_13 = arith.constant dense<0.000000e+00> : vector<10x128xf32>
    %15 = tpu.matmul %2, %14, %cst_13 {dimension_numbers = #tpu.dot_dimension_numbers<[1], [0], [0], [1], [0, 0, 1, 1], [], []>} : vector<10x10xf32>, vector<10x128xf32>, vector<10x128xf32> -> vector<10x128xf32>
    %16 = vector.broadcast %3 : vector<10x1xf32> to vector<10x128xf32>
    %17 = arith.addf %15, %16 : vector<10x128xf32>
    %cst_14 = arith.constant 0.000000e+00 : f32
    %18 = vector.broadcast %cst_14 : f32 to vector<10x128xf32>
    %19 = arith.maximumf %17, %18 : vector<10x128xf32>
    %cst_15 = arith.constant dense<0.000000e+00> : vector<3x128xf32>
    %20 = tpu.matmul %4, %19, %cst_15 {dimension_numbers = #tpu.dot_dimension_numbers<[1], [0], [0], [1], [0, 0, 1, 1], [], []>} : vector<3x10xf32>, vector<10x128xf32>, vector<3x128xf32> -> vector<3x128xf32>
    %21 = vector.broadcast %5 : vector<3x1xf32> to vector<3x128xf32>
    %22 = arith.addf %20, %21 : vector<3x128xf32>
    %23 = vector.extract_strided_slice %22 {offsets = [0, 0], sizes = [1, 128], strides = [1, 1]} : vector<3x128xf32> to vector<1x128xf32>
    %24 = vector.extract_strided_slice %22 {offsets = [1, 0], sizes = [1, 128], strides = [1, 1]} : vector<3x128xf32> to vector<1x128xf32>
    %25 = vector.extract_strided_slice %22 {offsets = [2, 0], sizes = [1, 128], strides = [1, 1]} : vector<3x128xf32> to vector<1x128xf32>
    %26 = arith.maximumf %23, %24 : vector<1x128xf32>
    %27 = arith.maximumf %26, %25 : vector<1x128xf32>
    %28 = arith.subf %23, %27 : vector<1x128xf32>
    %29 = math.exp %28 : vector<1x128xf32>
    %30 = arith.subf %24, %27 : vector<1x128xf32>
    %31 = math.exp %30 : vector<1x128xf32>
    %32 = arith.addf %29, %31 : vector<1x128xf32>
    %33 = arith.subf %25, %27 : vector<1x128xf32>
    %34 = math.exp %33 : vector<1x128xf32>
    %35 = arith.addf %32, %34 : vector<1x128xf32>
    %36 = math.log %35 : vector<1x128xf32>
    %37 = vector.broadcast %27 : vector<1x128xf32> to vector<3x128xf32>
    %38 = arith.subf %22, %37 : vector<3x128xf32>
    %39 = vector.broadcast %36 : vector<1x128xf32> to vector<3x128xf32>
    %40 = arith.subf %38, %39 : vector<3x128xf32>
    %c0_16 = arith.constant 0 : index
    %41 = arith.index_cast %7 : i32 to index
    %42 = vector.load %arg8[%c0_16, %41] : memref<3x128xf32, #tpu.memory_space<vmem>>, vector<3x128xf32>
    tpu.vector_store %arg8[%c0_16, %41], %40 {strides = array<i32>} : memref<3x128xf32, #tpu.memory_space<vmem>>, vector<3x128xf32>,
    %c1_i32 = arith.constant 1 : i32
    return
  }
  func.func @transform_0(%arg0: i32) -> (i32, i32) {
    %c0_i32 = arith.constant 0 : i32
    %c0_i32_0 = arith.constant 0 : i32
    return %c0_i32, %arg0 : i32, i32
  }
  func.func @transform_1(%arg0: i32) -> (i32, i32) {
    %c0_i32 = arith.constant 0 : i32
    %c0_i32_0 = arith.constant 0 : i32
    %c0_i32_1 = arith.constant 0 : i32
    return %c0_i32, %c0_i32_0 : i32, i32
  }
  func.func @transform_2(%arg0: i32) -> (i32, i32) {
    %c0_i32 = arith.constant 0 : i32
    %c0_i32_0 = arith.constant 0 : i32
    %c0_i32_1 = arith.constant 0 : i32
    return %c0_i32, %c0_i32_0 : i32, i32
  }
  func.func @transform_3(%arg0: i32) -> (i32, i32) {
    %c0_i32 = arith.constant 0 : i32
    %c0_i32_0 = arith.constant 0 : i32
    %c0_i32_1 = arith.constant 0 : i32
    return %c0_i32, %c0_i32_0 : i32, i32
  }
  func.func @transform_4(%arg0: i32) -> (i32, i32) {
    %c0_i32 = arith.constant 0 : i32
    %c0_i32_0 = arith.constant 0 : i32
    %c0_i32_1 = arith.constant 0 : i32
    return %c0_i32, %c0_i32_0 : i32, i32
  }
  func.func @transform_5(%arg0: i32) -> (i32, i32) {
    %c0_i32 = arith.constant 0 : i32
    %c0_i32_0 = arith.constant 0 : i32
    %c0_i32_1 = arith.constant 0 : i32
    return %c0_i32, %c0_i32_0 : i32, i32
  }
  func.func @transform_6(%arg0: i32) -> (i32, i32) {
    %c0_i32 = arith.constant 0 : i32
    %c0_i32_0 = arith.constant 0 : i32
    %c0_i32_1 = arith.constant 0 : i32
    return %c0_i32, %c0_i32_0 : i32, i32
  }
  func.func @transform_7(%arg0: i32) -> (i32, i32) {
    %c0_i32 = arith.constant 0 : i32
    %c0_i32_0 = arith.constant 0 : i32
    return %c0_i32, %arg0 : i32, i32
  }
}

</mosaic_0001>

<llo_original>
// kernel: tpu_custom_call.1
$region0: #{tpu_custom_call.1}
  #allocation0 [shape = 'u32[]', space=smem, size = 0x4, offset = 0x4, fixed_abs, tag = 'smem constant byte address 0x4 - core index']
  #allocation1 [shape = 'u32[72,128]{1,0:T(1,128)}', space=vmem, size = 0x9000, scoped, tag = 'internal scratch']
  %s0 = inlined_call_operand.vmem [shape: f32[4,128], index: 0, kind: input, shape index: {}]
  %s1 = inlined_call_operand.vmem [shape: f32[10,4], index: 1, kind: input, shape index: {}]
  %s2 = inlined_call_operand.vmem [shape: f32[10,1], index: 2, kind: input, shape index: {}]
  %s3 = inlined_call_operand.vmem [shape: f32[10,10], index: 3, kind: input, shape index: {}]
  %s4 = inlined_call_operand.vmem [shape: f32[10,1], index: 4, kind: input, shape index: {}]
  %s5 = inlined_call_operand.vmem [shape: f32[3,10], index: 5, kind: input, shape index: {}]
  %s6 = inlined_call_operand.vmem [shape: f32[3,1], index: 6, kind: input, shape index: {}]
  %s7 = inlined_call_operand.hbm [shape: f32[3,128], index: 7, kind: output, shape index: {}]
  %s8 = sld [smem:[#allocation0]]
  $region38: #{tpu_custom_call.1} parent=0
    _
  %s10 = ssub.s32 1, %s8
  %s11 = scalar_select 0, %s10, %s8
  $region1: #{tpu_custom_call.1} parent=0
    #allocation2 [shape = 'u8[2048]{0}', space=vmem, size = 0x800, scoped, tag = 'output window, operand 0, single buffered']
    #allocation3 [shape = 's32[1]{0}', space=sflag, size = 0x4, scoped, tag = 'scoped memory for tpu_custom_call.1']
    %12 = vsyncpa [#allocation3], 0
    // Predicated region
    $region2: #{tpu_custom_call.1} parent=1 // pred_check
      _
    $region3: #{tpu_custom_call.1} parent=1 // pred_check_branch
      %14 = sbr.rel (0) target = $region5
    $region4: #{tpu_custom_call.1} parent=1 // pred_region
      _
    $region5: #{tpu_custom_call.1} parent=1 // pred_fallthru
      _
    // Predicated region
    $region6: #{tpu_custom_call.1} parent=1 // pred_check
      _
    $region7: #{tpu_custom_call.1} parent=1 // pred_check_branch
      %16 = sbr.rel (0) target = $region9
    $region8: #{tpu_custom_call.1} parent=1 // pred_region
      _
    $region9: #{tpu_custom_call.1} parent=1 // pred_fallthru
      _
    // Predicated region
    $region10: #{tpu_custom_call.1} parent=1 // pred_check
      _
    $region11: #{tpu_custom_call.1} parent=1 // pred_check_branch
      %18 = sbr.rel (0) target = $region13
    $region12: #{tpu_custom_call.1} parent=1 // pred_region
      _
    $region13: #{tpu_custom_call.1} parent=1 // pred_fallthru
      _
    // Predicated region
    $region14: #{tpu_custom_call.1} parent=1 // pred_check
      _
    $region15: #{tpu_custom_call.1} parent=1 // pred_check_branch
      %20 = sbr.rel (0) target = $region17
    $region16: #{tpu_custom_call.1} parent=1 // pred_region
      _
    $region17: #{tpu_custom_call.1} parent=1 // pred_fallthru
      _
    // Predicated region
    $region18: #{tpu_custom_call.1} parent=1 // pred_check
      _
    $region19: #{tpu_custom_call.1} parent=1 // pred_check_branch
      %22 = sbr.rel (0) target = $region21
    $region20: #{tpu_custom_call.1} parent=1 // pred_region
      _
    $region21: #{tpu_custom_call.1} parent=1 // pred_fallthru
      _
    // Predicated region
    $region22: #{tpu_custom_call.1} parent=1 // pred_check
      _
    $region23: #{tpu_custom_call.1} parent=1 // pred_check_branch
      %24 = sbr.rel (0) target = $region25
    $region24: #{tpu_custom_call.1} parent=1 // pred_region
      _
    $region25: #{tpu_custom_call.1} parent=1 // pred_fallthru
      _
    // Predicated region
    $region26: #{tpu_custom_call.1} parent=1 // pred_check
      _
    $region27: #{tpu_custom_call.1} parent=1 // pred_check_branch
      %26 = sbr.rel (0) target = $region29
    $region28: #{tpu_custom_call.1} parent=1 // pred_region
      _
    $region29: #{tpu_custom_call.1} parent=1 // pred_fallthru
      _
    %v27 = vld [vmem:[%s1] sm:$0xff]
    %v28 = vld [vmem:[%s1 + $0x8] sm:$0x3]
    %v29 = vld [vmem:[%s2] sm:$0xff]
    %v30 = vld [vmem:[%s2 + $0x8] sm:$0x3]
    %v31 = vld [vmem:[%s3] sm:$0xff]
    %v32 = vld [vmem:[%s3 + $0x8] sm:$0x3]
    %v33 = vld [vmem:[%s4] sm:$0xff]
    %v34 = vld [vmem:[%s4 + $0x8] sm:$0x3]
    %v35 = vld [vmem:[%s5] sm:$0x7]
    %v36 = vld [vmem:[%s6] sm:$0x7]
    %v37 = vld [vmem:[%s0] sm:$0xf]
    %39 = vset.pattern.permute.xlu0 0
    %40 = vperm.xlu0 %39, %v29
    %v41 = vpop.permute.xlu0 %40
    %44 = vset.pattern.permute.xlu0 0
    %45 = vperm.xlu0 %44, %v30
    %v46 = vpop.permute.xlu0 %45
    %vm48 = vcmask 31744
    %v50 = vsel %vm48, %v27, 0
    %v53 = vsel %vm48, %v28, 0
    %vm55 = vcmask 1043456
    %v57 = vsel %vm55, %v37, 0
    %59 = vmatpush.msra.mxu0 0.0
    %60 = vmatpush.msra.mxu0 0.0
    %61 = vmatpush.msra.mxu0 0.0
    %62 = vmatpush.msra.mxu0 0.0
    %63 = vmatpush.msra.mxu0 0.0
    %64 = vmatpush.msra.mxu0 0.0
    %65 = vmatpush.msra.mxu0 0.0
    %66 = vmatpush.msra.mxu0 0.0
    %67 = vmatpush.msra.mxu0 0.0
    %68 = vmatpush.msra.mxu0 0.0
    %69 = vmatpush.msra.mxu0 0.0
    %70 = vmatpush.msra.mxu0 0.0
    %71 = vmatpush.msra.mxu0 0.0
    %72 = vmatpush.msra.mxu0 0.0
    %73 = vmatpush.msra.mxu0 0.0
    %74 = vmatpush.msra.mxu0 %v57
    %75 = vmatmul.f32.gmra.mxu0 %v50
    %v76 = vpop.f32.mrf.mxu0
    %v77 = vadd.f32 %v41, %v76
    %78 = vmatmul.f32.gmra.mxu0 %v53
    %v79 = vpop.f32.mrf.mxu0
    %v80 = vadd.f32 %v46, %v79
    %81 = vdwg.mxu0
    %v82 = vmax.f32 %v77, 0.0
    %v83 = vmax.f32 %v80, 0.0
    %85 = vset.pattern.permute.xlu0 0
    %86 = vperm.xlu0 %85, %v33
    %v87 = vpop.permute.xlu0 %86
    %90 = vset.pattern.permute.xlu0 0
    %91 = vperm.xlu0 %90, %v34
    %v92 = vpop.permute.xlu0 %91
    %vm94 = vcmask 80896
    %v96 = vsel %vm94, %v31, 0
    %v99 = vsel %vm94, %v32, 0
    %vm101 = vcmask 1041408
    %v103 = vsel %vm101, %v83, 0
    %105 = vmatpush.msra.mxu0 0.0
    %106 = vmatpush.msra.mxu0 0.0
    %107 = vmatpush.msra.mxu0 0.0
    %108 = vmatpush.msra.mxu0 0.0
    %109 = vmatpush.msra.mxu0 0.0
    %110 = vmatpush.msra.mxu0 0.0
    %111 = vmatpush.msra.mxu0 0.0
    %112 = vmatpush.msra.mxu0 0.0
    %113 = vmatpush.msra.mxu0 0.0
    %114 = vmatpush.msra.mxu0 0.0
    %115 = vmatpush.msra.mxu0 0.0
    %116 = vmatpush.msra.mxu0 0.0
    %117 = vmatpush.msra.mxu0 0.0
    %118 = vmatpush.msra.mxu0 0.0
    %119 = vmatpush.msra.mxu0 %v103
    %120 = vmatpush.msra.mxu0 %v82
    %121 = vmatmul.f32.gmra.mxu0 %v96
    %v122 = vpop.f32.mrf.mxu0
    %v123 = vadd.f32 %v87, %v122
    %124 = vmatmul.f32.gmra.mxu0 %v99
    %v125 = vpop.f32.mrf.mxu0
    %v126 = vadd.f32 %v92, %v125
    %127 = vdwg.mxu0
    %v128 = vmax.f32 %v123, 0.0
    %v129 = vmax.f32 %v126, 0.0
    %131 = vset.pattern.permute.xlu0 0
    %132 = vperm.xlu0 %131, %v36
    %v133 = vpop.permute.xlu0 %132
    %v136 = vsel %vm94, %v35, 0
    %v139 = vsel %vm101, %v129, 0
    %141 = vmatpush.msra.mxu0 0.0
    %142 = vmatpush.msra.mxu0 0.0
    %143 = vmatpush.msra.mxu0 0.0
    %144 = vmatpush.msra.mxu0 0.0
    %145 = vmatpush.msra.mxu0 0.0
    %146 = vmatpush.msra.mxu0 0.0
    %147 = vmatpush.msra.mxu0 0.0
    %148 = vmatpush.msra.mxu0 0.0
    %149 = vmatpush.msra.mxu0 0.0
    %150 = vmatpush.msra.mxu0 0.0
    %151 = vmatpush.msra.mxu0 0.0
    %152 = vmatpush.msra.mxu0 0.0
    %153 = vmatpush.msra.mxu0 0.0
    %154 = vmatpush.msra.mxu0 0.0
    %155 = vmatpush.msra.mxu0 %v139
    %156 = vmatpush.msra.mxu0 %v128
    %157 = vmatmul.f32.gmra.mxu0 %v136
    %v158 = vpop.f32.mrf.mxu0
    %v159 = vadd.f32 %v133, %v158
    %160 = vdwg.mxu0
    %v162 = vrot.slane %v159, 1
    %v164 = vmax.f32 %v159, %v162
    %v165 = vrot.slane %v159, 2
    %v167 = vmax.f32 %v164, %v165
    %v168 = vsub.f32 %v159, %v167
    %v169 = vmul.f32 %v168, 1.442695
    %v170 = vpow.pop %v169
    %v172 = vrot.slane %v167, 7
    %v174 = vsub.f32 %v159, %v172
    %v175 = vmul.f32 %v174, 1.442695
    %v176 = vpow.pop %v175
    %v178 = vrot.slane %v176, 1
    %v180 = vadd.f32 %v170, %v178
    %v181 = vrot.slane %v167, 6
    %v183 = vsub.f32 %v159, %v181
    %v184 = vmul.f32 %v183, 1.442695
    %v185 = vpow.pop %v184
    %v187 = vrot.slane %v185, 2
    %v189 = vadd.f32 %v180, %v187
    %v190 = vlog2.pop %v189
    %v191 = vmul.f32 %v190, 0.6931472
    %v192 = vperm.slane %v167, 0
    %v193 = vsub.f32 %v159, %v192
    %v194 = vperm.slane %v191, 0
    %v195 = vsub.f32 %v193, %v194
    %196 = vst [vmem:[#allocation2] sm:$0x7] %v195
    // Predicated region
    $region30: #{tpu_custom_call.1} parent=1 // pred_check
      _
    $region31: #{tpu_custom_call.1} parent=1 // pred_check_branch
      %198 = sbr.rel (0) target = $region33
    $region32: #{tpu_custom_call.1} parent=1 // pred_region
      %200 = vsyncadd [#allocation3], 0
      %s202 = sshll.u32 [#allocation2], 4
      %s203 = int_to_ptr.vmem [resolvable:$true] %s202
      %s204 = sshll.u32 %s7, 4
      %s205 = int_to_ptr.hbm [resolvable:$true] %s204
      %207 = dma.vmem_to_hbm [thread:$0]  %s203, 64, %s205, [#allocation3]
    $region33: #{tpu_custom_call.1} parent=1 // pred_fallthru
      _
    // Predicated region
    $region34: #{tpu_custom_call.1} parent=1 // pred_check
      _
    $region35: #{tpu_custom_call.1} parent=1 // pred_check_branch
      %209 = sbr.rel (0) target = $region37
    $region36: #{tpu_custom_call.1} parent=1 // pred_region
      %211 = dma.done [#allocation3], 64
    $region37: #{tpu_custom_call.1} parent=1 // pred_fallthru
      _
    %212 = vsyncpa [#allocation3], 1

</llo_original>
